<compile_context>
chip_gen: v5e
topology: v5e:2x2
jax: 0.10.0
libtpu: 0.0.40
codegen_flags: <defaults>
</compile_context>

<pallas_src>
import functools

import jax
import jax.numpy as jnp
from jax import lax
from jax.experimental import pallas as pl
from jax.experimental.pallas import tpu as pltpu


_LANE = 128
# Per-buffer budget for the streamed (M, TK) feature slab. Double-buffered
# slabs + (M, M) target + (M, M) accumulator stay under the 32 MiB default
# scoped VMEM on every generation (v7x only has 64 MiB physical per TC).
_FEATURE_SLAB_BYTES = 8 * 1024 * 1024


def _pick_tk(m, k, bytes_per_elem):
    """Largest lane-aligned K tile that fits the per-buffer VMEM budget."""
    if k <= _LANE:
        return k  # full-dim block (satisfies the (8,128) rule by equality)
    max_tk = max(_LANE, _FEATURE_SLAB_BYTES // max(1, m * bytes_per_elem))
    tk = min(k, max_tk)
    # Round down to a lane multiple. A final partial K block is zero-padded
    # by Pallas; zeros contribute 0 to X @ X^T so the Gram stays exact.
    tk = (tk // _LANE) * _LANE
    return max(tk, _LANE)


def _gram_kernel(x_ref, g_ref, *, inv_denom):
    k = pl.program_id(0)

    @pl.when(k == 0)
    def _():
        g_ref[...] = jnp.zeros_like(g_ref)

    x = x_ref[...]
    # Contract on K directly (dims (1,1)); no physical transpose of x.
    g_ref[...] += lax.dot_general(
        x, x,
        dimension_numbers=(((1,), (1,)), ((), ())),
        preferred_element_type=jnp.float32,
    )

    @pl.when(k == pl.num_programs(0) - 1)
    def _():
        g_ref[...] = g_ref[...] * inv_denom


def _style_loss_kernel(x_ref, t_ref, loss_ref, acc_ref, *, inv_denom, inv_mm):
    k = pl.program_id(0)

    @pl.when(k == 0)
    def _():
        acc_ref[...] = jnp.zeros_like(acc_ref)

    x = x_ref[...]
    acc_ref[...] += lax.dot_general(
        x, x,
        dimension_numbers=(((1,), (1,)), ((), ())),
        preferred_element_type=jnp.float32,
    )

    # One-time epilogue at the final K step: scale, diff vs. target, MSE.
    @pl.when(k == pl.num_programs(0) - 1)
    def _():
        g = acc_ref[...] * inv_denom
        diff = g - t_ref[...].astype(jnp.float32)
        loss_ref[0, 0] = jnp.sum(diff * diff) * inv_mm


def _pallas_gram(features, denom, tk=None):
    """features: (M, K) -> normalized Gram matrix (M, M) f32."""
    m, k = features.shape
    if tk is None:
        tk = _pick_tk(m, k, features.dtype.itemsize)
    grid = (pl.cdiv(k, tk),)
    kernel = functools.partial(_gram_kernel, inv_denom=1.0 / float(denom))
    return pl.pallas_call(
        kernel,
        out_shape=jax.ShapeDtypeStruct((m, m), jnp.float32),
        grid_spec=pltpu.PrefetchScalarGridSpec(
            num_scalar_prefetch=0,
            grid=grid,
            in_specs=[pl.BlockSpec((m, tk), lambda i: (0, i))],
            out_specs=pl.BlockSpec((m, m), lambda i: (0, 0)),
        ),
        compiler_params=pltpu.CompilerParams(
            dimension_semantics=("arbitrary",),
        ),
        cost_estimate=pl.CostEstimate(
            flops=2 * m * m * k,
            transcendentals=0,
            bytes_accessed=int(features.size * features.dtype.itemsize
                               + m * m * 4),
        ),
    )(features)


def _pallas_style_loss(features, target_gram, denom, tk=None):
    """features: (M, K), target_gram: (M, M) f32 -> scalar-shaped loss (1,1)."""
    m, k = features.shape
    if tk is None:
        tk = _pick_tk(m, k, features.dtype.itemsize)
    grid = (pl.cdiv(k, tk),)
    kernel = functools.partial(
        _style_loss_kernel,
        inv_denom=1.0 / float(denom),
        inv_mm=1.0 / float(m * m),
    )
    return pl.pallas_call(
        kernel,
        out_shape=jax.ShapeDtypeStruct((1, 1), jnp.float32),
        grid_spec=pltpu.PrefetchScalarGridSpec(
            num_scalar_prefetch=0,
            grid=grid,
            in_specs=[
                pl.BlockSpec((m, tk), lambda i: (0, i)),   # feature K-slab
                pl.BlockSpec((m, m), lambda i: (0, 0)),    # resident target
            ],
            out_specs=pl.BlockSpec((1, 1), lambda i: (0, 0)),
            scratch_shapes=[pltpu.VMEM((m, m), jnp.float32)],  # Gram accum
        ),
        compiler_params=pltpu.CompilerParams(
            dimension_semantics=("arbitrary",),
        ),
        cost_estimate=pl.CostEstimate(
            flops=2 * m * m * k + 3 * m * m,
            transcendentals=0,
            bytes_accessed=int(features.size * features.dtype.itemsize
                               + m * m * 4 + 4),
        ),
    )(features, target_gram)


def gram_matrix(x_nchw, compute_dtype=jnp.float32, tk=None):
    """Matches torch gram_matrix: view to (a*b, c*d), F@F.T / (a*b*c*d)."""
    a, b, c, d = x_nchw.shape
    feats = x_nchw.reshape(a * b, c * d).astype(compute_dtype)
    return _pallas_gram(feats, a * b * c * d, tk=tk)


class StyleLossPallas:
    """Mirrors torch StyleLoss: stores target Gram at init; forward returns
    the input unchanged and records self.loss = mse(G(input), target)."""

    def __init__(self, target_feature, compute_dtype=jnp.float32, tk=None):
        # compute_dtype=jnp.bfloat16 uses the bf16-native MXU and halves HBM
        # traffic (style losses tolerate ~1e-2 relative error); default f32.
        self.compute_dtype = compute_dtype
        self._tk = tk
        self.target = lax.stop_gradient(
            gram_matrix(target_feature, compute_dtype=compute_dtype, tk=tk))
        self.loss = None

    def __call__(self, x_nchw):
        a, b, c, d = x_nchw.shape
        feats = x_nchw.reshape(a * b, c * d).astype(self.compute_dtype)
        loss = _pallas_style_loss(feats, self.target, a * b * c * d,
                                  tk=self._tk)
        self.loss = loss[0, 0]
        return x_nchw  # StyleLoss.forward returns its input


if __name__ == "__main__":
    key = jax.random.PRNGKey(0)
    k_tgt, k_in = jax.random.split(key)

    # NCHW features: batch=2, channels=4, spatial=16x16 -> M=8, K=256.
    a, b, c, d = 2, 4, 16, 16
    target_feature = jax.random.normal(k_tgt, (a, b, c, d), dtype=jnp.float32)
    x = jax.random.normal(k_in, (a, b, c, d), dtype=jnp.float32)

    # Force TK=128 here so the multi-step K accumulation path (grid=(2,),
    # pl.when init/epilogue) is exercised even at this small test size.
    module = StyleLossPallas(target_feature, tk=128)
    out = module(x)

    jax.block_until_ready(out)
    jax.block_until_ready(module.loss)

    g_pallas = gram_matrix(x, tk=128)
    jax.block_until_ready(g_pallas)

    # Plain-JAX reference.
    def ref_gram(t):
        aa, bb, cc, dd = t.shape
        f = t.reshape(aa * bb, cc * dd)
        return (f @ f.T) / (aa * bb * cc * dd)

    g_ref = ref_gram(x)
    t_ref = ref_gram(target_feature)
    loss_ref = jnp.mean((g_ref - t_ref) ** 2)

    assert jnp.allclose(g_pallas, g_ref, rtol=1e-5, atol=1e-5)
    assert jnp.allclose(module.loss, loss_ref, rtol=1e-5, atol=1e-6)
    assert jnp.array_equal(out, x)

    print("KERNEL_OK")
</pallas_src>

<mosaic_0001>
module attributes {stable_mosaic.version = 11 : i64} {
  func.func @_gram_kernel(%arg0: i32, %arg1: memref<8x128xf32, #tpu.memory_space<vmem>>, %arg2: memref<8x8xf32, #tpu.memory_space<vmem>>) attributes {dimension_semantics = [#tpu.dimension_semantics<arbitrary>], iteration_bounds = array<i64: 2>, scalar_prefetch = 0 : i64, scratch_operands = 0 : i64, tpu.core_type = #tpu.core_type<tc>, window_params = [{transform_indices = @transform_0, window_bounds = array<i64: 8, 128>}, {pipeline_mode = #tpu.pipeline_mode<synchronous>, transform_indices = @transform_1, window_bounds = array<i64: 8, 8>}]} {
    %c0_i32 = arith.constant 0 : i32
    %0 = arith.cmpi eq, %arg0, %c0_i32 : i32
    %1 = arith.extui %0 : i1 to i32
    %c0_i32_0 = arith.constant 0 : i32
    %2 = arith.cmpi ne, %1, %c0_i32_0 : i32
    scf.if %2 {
      %cst_7 = arith.constant 0.000000e+00 : f32
      %11 = vector.broadcast %cst_7 : f32 to vector<8x8xf32>
      %c0_8 = arith.constant 0 : index
      %c0_9 = arith.constant 0 : index
      %12 = vector.load %arg2[%c0_8, %c0_9] : memref<8x8xf32, #tpu.memory_space<vmem>>, vector<8x8xf32>
      tpu.vector_store %arg2[%c0_8, %c0_9], %11 {strides = array<i32>} : memref<8x8xf32, #tpu.memory_space<vmem>>, vector<8x8xf32>,
    } else {
    }
    %c0 = arith.constant 0 : index
    %c0_1 = arith.constant 0 : index
    %3 = vector.load %arg1[%c0, %c0_1] : memref<8x128xf32, #tpu.memory_space<vmem>>, vector<8x128xf32>
    %c0_2 = arith.constant 0 : index
    %c0_3 = arith.constant 0 : index
    %4 = vector.load %arg2[%c0_2, %c0_3] : memref<8x8xf32, #tpu.memory_space<vmem>>, vector<8x8xf32>
    %cst = arith.constant dense<0.000000e+00> : vector<8x8xf32>
    %5 = tpu.matmul %3, %3, %cst {dimension_numbers = #tpu.dot_dimension_numbers<[1], [1], [0], [0], [0, 0, 1, 0], [], []>} : vector<8x128xf32>, vector<8x128xf32>, vector<8x8xf32> -> vector<8x8xf32>
    %6 = arith.addf %4, %5 : vector<8x8xf32>
    %c0_4 = arith.constant 0 : index
    %c0_5 = arith.constant 0 : index
    %7 = vector.load %arg2[%c0_4, %c0_5] : memref<8x8xf32, #tpu.memory_space<vmem>>, vector<8x8xf32>
    tpu.vector_store %arg2[%c0_4, %c0_5], %6 {strides = array<i32>} : memref<8x8xf32, #tpu.memory_space<vmem>>, vector<8x8xf32>,
    %c1_i32 = arith.constant 1 : i32
    %8 = arith.cmpi eq, %arg0, %c1_i32 : i32
    %9 = arith.extui %8 : i1 to i32
    %c0_i32_6 = arith.constant 0 : i32
    %10 = arith.cmpi ne, %9, %c0_i32_6 : i32
    scf.if %10 {
      %c0_7 = arith.constant 0 : index
      %c0_8 = arith.constant 0 : index
      %11 = vector.load %arg2[%c0_7, %c0_8] : memref<8x8xf32, #tpu.memory_space<vmem>>, vector<8x8xf32>
      %cst_9 = arith.constant 4.8828125E-4 : f32
      %12 = vector.broadcast %cst_9 : f32 to vector<8x8xf32>
      %13 = arith.mulf %11, %12 : vector<8x8xf32>
      %c0_10 = arith.constant 0 : index
      %c0_11 = arith.constant 0 : index
      %14 = vector.load %arg2[%c0_10, %c0_11] : memref<8x8xf32, #tpu.memory_space<vmem>>, vector<8x8xf32>
      tpu.vector_store %arg2[%c0_10, %c0_11], %13 {strides = array<i32>} : memref<8x8xf32, #tpu.memory_space<vmem>>, vector<8x8xf32>,
    } else {
    }
    return
  }
  func.func @transform_0(%arg0: i32) -> (i32, i32) {
    %c0_i32 = arith.constant 0 : i32
    %c0_i32_0 = arith.constant 0 : i32
    return %c0_i32, %arg0 : i32, i32
  }
  func.func @transform_1(%arg0: i32) -> (i32, i32) {
    %c0_i32 = arith.constant 0 : i32
    %c0_i32_0 = arith.constant 0 : i32
    %c0_i32_1 = arith.constant 0 : i32
    return %c0_i32, %c0_i32_0 : i32, i32
  }
}

</mosaic_0001>

<llo_original>
// kernel: tpu_custom_call.1
$region0: #{tpu_custom_call.1}
  #allocation0 [shape = 'u32[]', space=smem, size = 0x4, offset = 0x4, fixed_abs, tag = 'smem constant byte address 0x4 - core index']
  #allocation1 [shape = 'u32[72,128]{1,0:T(1,128)}', space=vmem, size = 0x9000, scoped, tag = 'internal scratch']
  %s0 = inlined_call_operand.hbm [shape: f32[8,256], index: 0, kind: input, shape index: {}]
  %s1 = inlined_call_operand.hbm [shape: f32[8,8], index: 1, kind: output, shape index: {}]
  %s2 = sld [smem:[#allocation0]]
  $region49: #{tpu_custom_call.1} parent=0
    _
  %s4 = ssub.s32 1, %s2
  %s5 = scalar_select 0, %s4, %s2
  $region1: #{tpu_custom_call.1} parent=0
    #allocation2 [shape = 'u8[8192]{0}', space=vmem, size = 0x2000, scoped, tag = 'input window, operand 0']
    #allocation3 [shape = 's32[2]{0}', space=sflag, size = 0x8, scoped, tag = 'scoped memory for tpu_custom_call.1']
    #allocation4 [shape = 's32[2]{0}', space=sflag, size = 0x8, scoped, tag = 'scoped memory for tpu_custom_call.1']
    #allocation5 [shape = 'u8[4096]{0}', space=vmem, size = 0x1000, scoped, tag = 'output window, operand 0, single buffered']
    %6 = vsyncpa [#allocation3], 0
    %s7 = scalar_lea.sflag [#allocation3], 1
    %8 = vsyncpa %s7, 0
    %9 = vsyncpa [#allocation4], 0
    loop: start=0, step=1, limit=4
    $region2: #{tpu_custom_call.1} parent=1 // loop_pre_header
      _
    $region3: #{tpu_custom_call.1} parent=1 // loop_header
      %s11 = sphi 0, %s15
      %p12 = scmp.ge.s32.totalorder %s11, 4
      %s21 = sphi 0, %s23
      %s24 = sphi 0, %s21
      %s25 = sphi 0, %s24
      %s41 = sphi 0, %s25
      %s45 = sphi 0, %s45
      %s47 = sphi 0, %s45
      %s48 = sphi 0, %s47
      %s62 = sphi 0, %s48
    $region4: #{tpu_custom_call.1} parent=1 // loop_header_branch
      %14 = sbr.rel (%p12) target = $region8
    $region5: #{tpu_custom_call.1} parent=1 // loop_body
      %s16 = ssub.s32 %s11, 1
      %s17 = ssub.s32 %s11, 2
      %s18 = sadd.s32 %s11, 1
      %s19 = ssub.s32 %s11, %s18
      %p20 = scmp.eq.s32.totalorder %s19, 0
      %s22 = sadd.s32 %s21, 1
      %s23 = scalar_select %p20, %s21, %s22
      %p26 = pneg %p20
      %p27 = scmp.eq.s32.totalorder %s11, 1
      %p28 = por %p26, %p27
      %p29 = scmp.ne.s32.totalorder %s21, %s24
      %p30 = scmp.eq.s32.totalorder %s11, 0
      %p31 = por %p29, %p30
      %p32 = scmp.ne.s32.totalorder %s21, %s24
      %p33 = scmp.eq.s32.totalorder %s16, 1
      %p34 = por %p32, %p33
      %p35 = scmp.ne.s32.totalorder %s24, %s25
      %p36 = scmp.eq.s32.totalorder %s16, 0
      %p37 = por %p35, %p36
      %p38 = scmp.ne.s32.totalorder %s24, %s25
      %p39 = scmp.eq.s32.totalorder %s17, 1
      %p40 = por %p38, %p39
      %p42 = scmp.ne.s32.totalorder %s25, %s41
      %p43 = scmp.eq.s32.totalorder %s17, 0
      %p44 = por %p42, %p43
      %s46 = sadd.s32 %s45, 1
      %p49 = scmp.eq.s32.totalorder %s11, 1
      %p50 = scmp.ne.s32.totalorder %s45, %s47
      %p51 = scmp.eq.s32.totalorder %s11, 0
      %p52 = por %p50, %p51
      %p53 = scmp.ne.s32.totalorder %s45, %s47
      %p54 = scmp.eq.s32.totalorder %s16, 1
      %p55 = por %p53, %p54
      %p56 = scmp.ne.s32.totalorder %s47, %s48
      %p57 = scmp.eq.s32.totalorder %s16, 0
      %p58 = por %p56, %p57
      %p59 = scmp.ne.s32.totalorder %s47, %s48
      %p60 = scmp.eq.s32.totalorder %s17, 1
      %p61 = por %p59, %p60
      %p63 = scmp.ne.s32.totalorder %s48, %s62
      %p64 = scmp.eq.s32.totalorder %s17, 0
      %p65 = por %p63, %p64
      %p66 = scmp.le.s32.totalorder 1, %s11
      %p67 = scmp.lt.s32.totalorder %s11, 3
      %p68 = pnand %p66, %p67
      %p69 = pneg %p68
      // Predicated region
      $region9: #{tpu_custom_call.1} parent=5 // pred_check
        _
      $region10: #{tpu_custom_call.1} parent=5 // pred_check_branch
        %71 = sbr.rel (%p68) target = $region12
      $region11: #{tpu_custom_call.1} parent=5 // pred_region
        %s72 = ssub.s32 %s11, 1
      $region12: #{tpu_custom_call.1} parent=5 // pred_fallthru
        _
      %p73 = scmp.lt.s32.totalorder %s11, 2
      // Predicated region
      $region13: #{tpu_custom_call.1} parent=5 // pred_check
        %p74 = pneg %p73
      $region14: #{tpu_custom_call.1} parent=5 // pred_check_branch
        %76 = sbr.rel (%p74) target = $region16
      $region15: #{tpu_custom_call.1} parent=5 // pred_region
        // Predicated region
        $region17: #{tpu_custom_call.1} parent=15 // pred_check
          %p77 = pneg %p31
        $region18: #{tpu_custom_call.1} parent=15 // pred_check_branch
          %79 = sbr.rel (%p77) target = $region20
        $region19: #{tpu_custom_call.1} parent=15 // pred_region
          %s80 = sand.u32 %s21, 1
          %s81 = scalar_lea.sflag [#allocation3], %s80
          %s82 = sand.u32 %s21, 1
          %s83 = smul.addr %s82, 8
          %s84 = scalar_lea.vmem [#allocation2], %s83
          %86 = vsyncadd %s81, 0
          %s87 = smul.addr %s11, 8
          %s88 = scalar_lea.hbm %s0, %s87
          %s90 = sshll.u32 %s88, 4
          %s91 = int_to_ptr.hbm [resolvable:$true] %s90
          %s92 = sshll.u32 %s84, 4
          %s93 = int_to_ptr.vmem [resolvable:$true] %s92
          %95 = dma.hbm_to_vmem [thread:$0]  %s91, 128, %s93, %s81
        $region20: #{tpu_custom_call.1} parent=15 // pred_fallthru
          _
      $region16: #{tpu_custom_call.1} parent=5 // pred_fallthru
        _
      %p96 = scmp.le.s32.totalorder 1, %s11
      %p97 = scmp.lt.s32.totalorder %s11, 3
      %p98 = pnand %p96, %p97
      %p99 = pneg %p98
      // Predicated region
      $region21: #{tpu_custom_call.1} parent=5 // pred_check
        _
      $region22: #{tpu_custom_call.1} parent=5 // pred_check_branch
        %101 = sbr.rel (%p98) target = $region24
      $region23: #{tpu_custom_call.1} parent=5 // pred_region
        %s102 = ssub.s32 %s11, 1
        %s103 = sand.u32 %s24, 1
        %s104 = scalar_lea.sflag [#allocation3], %s103
        %s105 = sand.u32 %s24, 1
        %s106 = smul.addr %s105, 8
        %s107 = scalar_lea.vmem [#allocation2], %s106
        // Predicated region
        $region25: #{tpu_custom_call.1} parent=23 // pred_check
          %p108 = pneg %p37
        $region26: #{tpu_custom_call.1} parent=23 // pred_check_branch
          %110 = sbr.rel (%p108) target = $region28
        $region27: #{tpu_custom_call.1} parent=23 // pred_region
          %112 = dma.done %s104, 128
        $region28: #{tpu_custom_call.1} parent=23 // pred_fallthru
          _
        %s113 = sand.u32 %s24, 1
        %s114 = scalar_lea.sflag [#allocation3], %s113
        %s115 = sand.u32 %s24, 1
        %s116 = smul.addr %s115, 8
        %s117 = scalar_lea.vmem [#allocation2], %s116
        %p118 = pneg %p37
        %p119 = pneg %p34
        %p120 = pneg %p58
        %p121 = pneg %p55
        %p122 = scmp.eq.s32.totalorder %s16, 0
        // Predicated region
        $region29: #{tpu_custom_call.1} parent=23 // pred_check
          %p123 = pneg %p122
        $region30: #{tpu_custom_call.1} parent=23 // pred_check_branch
          %125 = sbr.rel (%p123) target = $region32
        $region31: #{tpu_custom_call.1} parent=23 // pred_region
          %vm126 = vcmask 64512
          %127 = vst.msk [vmem:[#allocation5] sm:$0xff] %vm126, 0.0
        $region32: #{tpu_custom_call.1} parent=23 // pred_fallthru
          _
        %v128 = vld [vmem:[%s107] sm:$0xff]
        %v129 = vld [vmem:[#allocation5] sm:$0xff]
        %130 = vmatpush.xpose.msra.mxu0 0.0
        %131 = vmatpush.xpose.msra.mxu0 0.0
        %132 = vmatpush.xpose.msra.mxu0 0.0
        %133 = vmatpush.xpose.msra.mxu0 0.0
        %134 = vmatpush.xpose.msra.mxu0 0.0
        %135 = vmatpush.xpose.msra.mxu0 0.0
        %136 = vmatpush.xpose.msra.mxu0 0.0
        %137 = vmatpush.xpose.msra.mxu0 0.0
        %138 = vmatpush.xpose.msra.mxu0 0.0
        %139 = vmatpush.xpose.msra.mxu0 0.0
        %140 = vmatpush.xpose.msra.mxu0 0.0
        %141 = vmatpush.xpose.msra.mxu0 0.0
        %142 = vmatpush.xpose.msra.mxu0 0.0
        %143 = vmatpush.xpose.msra.mxu0 0.0
        %144 = vmatpush.xpose.msra.mxu0 0.0
        %145 = vmatpush.xpose.msra.mxu0 %v128
        %146 = vmatmul.f32.gmra.mxu0 %v128
        %v147 = vpop.f32.mrf.mxu0
        %v148 = vadd.f32 0.0, %v147
        %149 = vdwg.mxu0
        %v150 = vadd.f32 %v129, %v148
        %vm151 = vcmask 64512
        %152 = vst.msk [vmem:[#allocation5] sm:$0xff] %vm151, %v150
        %p153 = scmp.eq.s32.totalorder %s16, 1
        // Predicated region
        $region33: #{tpu_custom_call.1} parent=23 // pred_check
          %p154 = pneg %p153
        $region34: #{tpu_custom_call.1} parent=23 // pred_check_branch
          %156 = sbr.rel (%p154) target = $region36
        $region35: #{tpu_custom_call.1} parent=23 // pred_region
          %v157 = vld [vmem:[#allocation5] sm:$0xff]
          %v158 = vmul.f32 %v157, 0.00048828125
          %159 = vst.msk [vmem:[#allocation5] sm:$0xff] %vm151, %v158
        $region36: #{tpu_custom_call.1} parent=23 // pred_fallthru
          _
        // Predicated region
        $region37: #{tpu_custom_call.1} parent=23 // pred_check
          %p160 = pneg %p55
        $region38: #{tpu_custom_call.1} parent=23 // pred_check_branch
          %162 = sbr.rel (%p160) target = $region40
        $region39: #{tpu_custom_call.1} parent=23 // pred_region
          %164 = vsyncadd [#allocation4], 0
          %s166 = sshll.u32 [#allocation5], 4
          %s167 = int_to_ptr.vmem [resolvable:$true] %s166
          %s168 = sshll.u32 %s1, 4
          %s169 = int_to_ptr.hbm [resolvable:$true] %s168
          %171 = dma.vmem_to_hbm [thread:$0]  %s167, 128, %s169, [#allocation4]
        $region40: #{tpu_custom_call.1} parent=23 // pred_fallthru
          _
        // Predicated region
        $region41: #{tpu_custom_call.1} parent=23 // pred_check
          %p172 = pneg %p55
        $region42: #{tpu_custom_call.1} parent=23 // pred_check_branch
          %174 = sbr.rel (%p172) target = $region44
        $region43: #{tpu_custom_call.1} parent=23 // pred_region
          %176 = dma.done [#allocation4], 128
        $region44: #{tpu_custom_call.1} parent=23 // pred_fallthru
          _
      $region24: #{tpu_custom_call.1} parent=5 // pred_fallthru
        _
      %p177 = scmp.le.s32.totalorder 2, %s11
      // Predicated region
      $region45: #{tpu_custom_call.1} parent=5 // pred_check
        %p178 = pneg %p177
      $region46: #{tpu_custom_call.1} parent=5 // pred_check_branch
        %180 = sbr.rel (%p178) target = $region48
      $region47: #{tpu_custom_call.1} parent=5 // pred_region
        %s181 = ssub.s32 %s11, 2
      $region48: #{tpu_custom_call.1} parent=5 // pred_fallthru
        _
    $region6: #{tpu_custom_call.1} parent=1 // loop_footer
      %s15 = sadd.s32 1, %s11
    $region7: #{tpu_custom_call.1} parent=1 // loop_footer_branch
      %10 = sbr.rel target = $region3
    $region8: #{tpu_custom_call.1} parent=1 // loop_exit
      _
    %182 = vsyncpa [#allocation3], 1
    %s183 = scalar_lea.sflag [#allocation3], 1
    %184 = vsyncpa %s183, 1
    %185 = vsyncpa [#allocation4], 1
    %s186 = scalar_lea.sflag [#allocation4], 1
    %187 = vsyncpa %s186, 1

</llo_original>
